<compile_context>
chip_gen: v7x
topology: tpu7x:2x2x1
jax: 0.10.0
libtpu: 0.0.40
codegen_flags: <defaults>
</compile_context>

<pallas_src>
import numpy as np

import jax
import jax.numpy as jnp
from jax.experimental import pallas as pl
from jax.experimental.pallas import tpu as pltpu

BN_EPS = 1e-5


def _llb_linear_kernel(x_ref, wt_ref, p_ref, o_ref, acc_ref):
    # x_ref:   (B, tk)   input tile (any float dtype; cast to bf16 here)
    # wt_ref:  (tk, tn)  bf16 tile of pre-transposed weight
    # p_ref:   (2, tn)   f32, row 0 = gamma, row 1 = beta
    # o_ref:   (B, tn)   output tile (bf16 by default)
    # acc_ref: (B, tn)   f32 accumulator scratch (resident across the k axis)
    k = pl.program_id(1)

    @pl.when(k == 0)
    def _():
        acc_ref[...] = jnp.zeros_like(acc_ref)

    acc_ref[...] += jnp.dot(
        x_ref[...].astype(jnp.bfloat16), wt_ref[...],
        preferred_element_type=jnp.float32)

    @pl.when(k == pl.num_programs(1) - 1)
    def _():
        h = acc_ref[...]
        # Single-pass training-mode BatchNorm1d (biased variance over batch).
        # The Linear bias is omitted on purpose: the mean subtraction cancels
        # it exactly, so forward activations are unchanged.
        # TODO(synk): E[h^2]-E[h]^2 can lose precision when |mean| >> std; a
        # centered two-pass variant would be needed for poorly-centered layers.
        inv_b = 1.0 / h.shape[0]
        mean = jnp.sum(h, axis=0, keepdims=True) * inv_b
        mean_sq = jnp.sum(h * h, axis=0, keepdims=True) * inv_b
        var = jnp.maximum(mean_sq - mean * mean, 0.0)

        p = p_ref[...]
        gamma = p[0:1, :]
        beta = p[1:2, :]
        scale = gamma * jax.lax.rsqrt(var + BN_EPS)   # EUP rsqrt (free slot)
        shift = beta - mean * scale

        # ReLU (args.nonlin == 'relu'); dropout is identity in eval mode.
        o_ref[...] = jnp.maximum(h * scale + shift, 0.0).astype(o_ref.dtype)


def _round_up(v, m):
    return (v + m - 1) // m * m


def prepare_params(weight, gamma, beta):
    """One-time parameter preparation (hoisted out of the forward path).

    weight: (num_out, num_in) PyTorch nn.Linear layout
    gamma, beta: (num_out,) BatchNorm1d affine params
    Returns (wt, bn_params, num_out):
      wt        (num_in, num_out_padded) bf16, pre-transposed, lane-padded to 128
      bn_params (2, num_out_padded)      f32  (gamma row 0, beta row 1, pad = 0)
      num_out   original feature count (used to slice the padded output)
    """
    weight = jnp.asarray(weight, jnp.float32)
    num_out, _ = weight.shape
    num_out_p = max(_round_up(num_out, 128), 128)
    pad = num_out_p - num_out

    wt = weight.T.astype(jnp.bfloat16)
    bn = jnp.stack([jnp.asarray(gamma, jnp.float32),
                    jnp.asarray(beta, jnp.float32)], axis=0)
    if pad:
        wt = jnp.pad(wt, ((0, 0), (0, pad)))       # zero cols -> padded h == 0
        bn = jnp.pad(bn, ((0, 0), (0, pad)))       # gamma/beta pad = 0 -> out 0
    return wt, bn, num_out


def _tpu_caps():
    """Generation-aware capabilities with safe fallbacks."""
    vmem_cap = 128 << 20      # v5e / v6e physical VMEM per TensorCore
    num_cores = 1             # v5e / v6e have 1 TC; v7x has 2
    try:
        info = pltpu.get_tpu_info()
        vmem_cap = int(getattr(info, "vmem_capacity_bytes", vmem_cap))
        for attr in ("num_cores", "num_tensorcores", "tensorcore_count",
                     "core_count"):
            v = getattr(info, attr, None)
            if isinstance(v, int) and v > 0:
                num_cores = v
                break
    except Exception:
        pass
    return vmem_cap, num_cores


def _plan(B, num_in, num_out_p, x_bytes, out_bytes):
    """Pick (tn, tk, buffer depths, vmem limit) from chip generation + shape."""
    vmem_cap, num_cores = _tpu_caps()
    budget = min(int(0.6 * vmem_cap), 96 << 20)   # headroom for compiler scratch

    # --- K (num_in) tiling: bound x's resident VMEM footprint ---------------
    if B * num_in * x_bytes <= budget // 3 or num_in % 128 != 0:
        tk = num_in          # whole reduction dim per step (single K block)
        # TODO(synk): a non-128-divisible num_in that is also too large for
        # VMEM would need an input-padding path (not hit by this module).
    else:
        per_row = max(1, B * x_bytes)
        tk_cap = max(128, (budget // 4) // per_row // 128 * 128)
        tk = 128
        for t in range(128, min(num_in, tk_cap) + 1, 128):
            if num_in % t == 0:
                tk = t
    n_k = num_in // tk if num_in % tk == 0 else pl.cdiv(num_in, tk)
    x_bufs = 1 if n_k == 1 else 2          # grid-invariant x -> single buffer
    x_resident = x_bufs * B * tk * x_bytes

    # --- N (num_out) tiling --------------------------------------------------
    cands = sorted((t for t in range(128, min(num_out_p, 4096) + 1, 128)
                    if num_out_p % t == 0), reverse=True)

    def footprint(tn, w_bufs):
        return (x_resident
                + w_bufs * tk * tn * 2     # bf16 weight tiles
                + 2 * 2 * tn * 4           # gamma/beta tiles
                + 2 * B * tn * out_bytes   # output tiles
                + B * tn * 4)              # f32 accumulator scratch

    # >= 2 grid steps per TensorCore on multi-core chips (v7x); on single-TC
    # chips (v5e/v6e) just take the largest lane-dense tile that fits.
    min_steps = 2 * num_cores if num_cores > 1 else 1
    can_split = num_out_p // 128 >= min_steps

    tn, w_bufs = cands[-1], 2
    for t in cands:
        if can_split and num_out_p // t < min_steps:
            continue
        for wb in (3, 2):                  # prefer 3-deep weight streaming
            if footprint(t, wb) <= budget:
                tn, w_bufs = t, wb
                break
        else:
            continue
        break

    n_j = num_out_p // tn
    w_bufs = max(1, min(w_bufs, n_j * n_k))   # don't over-buffer tiny grids

    vmem_limit = int(min(max(2 * footprint(tn, w_bufs), 8 << 20),
                         min(vmem_cap, 128 << 20)))
    return tn, tk, n_j, n_k, w_bufs, x_bufs, vmem_limit


def local_loss_block_linear_forward(x, wt, bn_params, num_out=None, *,
                                    out_dtype=jnp.bfloat16):
    """Fused Linear -> BatchNorm1d (training stats) -> ReLU forward.

    x:         (B, num_in) float array (f32 or bf16; cast to bf16 in-kernel)
    wt:        (num_in, num_out_padded) bf16 pre-transposed weight
    bn_params: (2, num_out_padded) f32 (gamma row 0, beta row 1)
    num_out:   original feature count (defaults to wt.shape[1])
    Returns (h, loss) with h (B, num_out) in out_dtype and loss == 0.0 (the
    local-loss branch of the PyTorch module is not taken).
    """
    B, num_in = x.shape
    num_out_p = wt.shape[1]
    if num_out is None:
        num_out = num_out_p
    assert wt.shape[0] == num_in and bn_params.shape == (2, num_out_p)
    assert num_out_p % 128 == 0 and num_out <= num_out_p

    x_bytes = np.dtype(x.dtype).itemsize
    out_bytes = np.dtype(out_dtype).itemsize
    tn, tk, n_j, n_k, w_bufs, x_bufs, vmem_limit = _plan(
        B, num_in, num_out_p, x_bytes, out_bytes)

    def run(use_pipeline_mode):
        def spec(shape, imap, bufs=None):
            if use_pipeline_mode and bufs is not None and bufs != 2:
                return pl.BlockSpec(shape, imap, pipeline_mode=pl.Buffered(bufs))
            return pl.BlockSpec(shape, imap)

        return pl.pallas_call(
            _llb_linear_kernel,
            out_shape=jax.ShapeDtypeStruct((B, num_out_p), out_dtype),
            grid_spec=pltpu.PrefetchScalarGridSpec(
                num_scalar_prefetch=0,
                grid=(n_j, n_k),
                in_specs=[
                    spec((B, tk), lambda j, k: (0, k), x_bufs),    # x tile
                    spec((tk, tn), lambda j, k: (k, j), w_bufs),   # weight tile
                    spec((2, tn), lambda j, k: (0, j)),            # gamma/beta
                ],
                out_specs=pl.BlockSpec((B, tn), lambda j, k: (0, j)),
                scratch_shapes=[pltpu.VMEM((B, tn), jnp.float32)],
            ),
            compiler_params=pltpu.CompilerParams(
                dimension_semantics=("parallel", "arbitrary"),
                vmem_limit_bytes=vmem_limit,
            ),
        )(x, wt, bn_params)

    try:
        h = run(use_pipeline_mode=True)
    except Exception:
        # Fallback for environments without BlockSpec(pipeline_mode=...).
        h = run(use_pipeline_mode=False)

    if num_out != num_out_p:
        h = h[:, :num_out]

    # TODO(synk): LossSim / LossPred / LossRecon and the local optimizer step
    # are training-time side modules; forward returns loss = 0.0 exactly as the
    # `else` branch of the PyTorch module does.
    # TODO(synk): BatchNorm1d running_mean/running_var updates are not emitted;
    # if added (or an eval-mode path), the Linear bias must be reinstated.
    return h, 0.0


def _reference_forward_f32(x, weight, bias, gamma, beta):
    # Full-f32 reference of the PyTorch module (with the Linear bias kept).
    h = x @ weight.T + bias[None, :]
    mean = jnp.mean(h, axis=0, keepdims=True)
    var = jnp.mean((h - mean) ** 2, axis=0, keepdims=True)
    hn = (h - mean) / jnp.sqrt(var + BN_EPS)
    return jnp.maximum(hn * gamma[None, :] + beta[None, :], 0.0)


def _reference_forward_matched(x, weight, bias, gamma, beta):
    # Matched precision path (bf16 matmul operands, f32 accumulation) with the
    # bias kept -> numerically demonstrates the bias-cancellation identity.
    h = jnp.dot(x.astype(jnp.bfloat16), weight.T.astype(jnp.bfloat16),
                preferred_element_type=jnp.float32) + bias[None, :]
    mean = jnp.mean(h, axis=0, keepdims=True)
    var = jnp.mean(h * h, axis=0, keepdims=True) - mean * mean
    hn = (h - mean) * jax.lax.rsqrt(jnp.maximum(var, 0.0) + BN_EPS)
    return jnp.maximum(hn * gamma[None, :] + beta[None, :], 0.0)


if __name__ == "__main__":
    # Small shapes consistent with the module: batch=8, num_in=32, num_out=256.
    B, num_in, num_out, num_classes = 8, 32, 256, 10

    key = jax.random.PRNGKey(0)
    kx, kw, kb = jax.random.split(key, 3)

    x = jax.random.normal(kx, (B, num_in), dtype=jnp.float32)

    # Deterministic parameter init (kaiming-uniform-ish bound like nn.Linear).
    bound = 1.0 / jnp.sqrt(jnp.float32(num_in))
    weight = jax.random.uniform(kw, (num_out, num_in), jnp.float32, -bound, bound)
    bias = jax.random.uniform(kb, (num_out,), jnp.float32, -bound, bound)
    gamma = jnp.ones((num_out,), jnp.float32)   # nn.init.constant_(bn.weight, 1)
    beta = jnp.zeros((num_out,), jnp.float32)   # nn.init.constant_(bn.bias, 0)

    # y / y_onehot only feed the (skipped) local-loss branch.
    y = jax.random.randint(jax.random.PRNGKey(1), (B,), 0, num_classes)
    y_onehot = jax.nn.one_hot(y, num_classes, dtype=jnp.float32)
    del y, y_onehot

    # One-time parameter preparation (transpose, bf16 cast, lane padding).
    wt, bn_params, n_out = prepare_params(weight, gamma, beta)

    # Default bf16 activation output (halves writeback, feeds next block in bf16).
    h, loss = local_loss_block_linear_forward(x, wt, bn_params, n_out)
    h = jax.block_until_ready(h)
    assert h.shape == (B, num_out) and h.dtype == jnp.bfloat16
    assert loss == 0.0

    ref_m = _reference_forward_matched(x, weight, bias, gamma, beta)
    ref_f32 = _reference_forward_f32(x, weight, bias, gamma, beta)

    # bf16 output vs matched-precision reference (tolerance = bf16 rounding).
    assert jnp.allclose(h.astype(jnp.float32), ref_m, atol=3e-2, rtol=3e-2), \
        "bf16 output mismatch vs matched reference"

    # f32 output for a tight check of the fused math (incl. bias cancellation).
    h32, _ = local_loss_block_linear_forward(x, wt, bn_params, n_out,
                                             out_dtype=jnp.float32)
    h32 = jax.block_until_ready(h32)
    assert jnp.allclose(h32, ref_m, atol=2e-3, rtol=2e-3), \
        "f32 output mismatch vs matched reference"
    assert jnp.allclose(h32, ref_f32, atol=1e-1, rtol=1e-1), \
        "f32 output mismatch vs full-f32 reference"

    # Exercise the num_out % 128 != 0 padding path with a tiny second shape.
    num_out2 = 200
    w2 = jax.random.uniform(jax.random.PRNGKey(2), (num_out2, num_in),
                            jnp.float32, -bound, bound)
    b2 = jnp.zeros((num_out2,), jnp.float32)
    g2 = jnp.ones((num_out2,), jnp.float32)
    be2 = jnp.zeros((num_out2,), jnp.float32)
    wt2, bn2, n_out2 = prepare_params(w2, g2, be2)
    h2, _ = local_loss_block_linear_forward(x, wt2, bn2, n_out2,
                                            out_dtype=jnp.float32)
    h2 = jax.block_until_ready(h2)
    ref2 = _reference_forward_matched(x, w2, b2, g2, be2)
    assert h2.shape == (B, num_out2)
    assert jnp.allclose(h2, ref2, atol=2e-3, rtol=2e-3), \
        "padded num_out path mismatch"

    print("KERNEL_OK")
</pallas_src>

<mosaic_0001>
module attributes {stable_mosaic.version = 11 : i64} {
  func.func @_llb_linear_kernel(%arg0: i32, %arg1: i32, %arg2: memref<8x32xf32, #tpu.memory_space<vmem>>, %arg3: memref<32x256xbf16, #tpu.memory_space<vmem>>, %arg4: memref<2x256xf32, #tpu.memory_space<vmem>>, %arg5: memref<8x256xbf16, #tpu.memory_space<vmem>>, %arg6: memref<8x256xf32, #tpu.memory_space<vmem>>) attributes {dimension_semantics = [#tpu.dimension_semantics<parallel>, #tpu.dimension_semantics<arbitrary>], iteration_bounds = array<i64: 1, 1>, scalar_prefetch = 0 : i64, scratch_operands = 1 : i64, tpu.core_type = #tpu.core_type<tc>, window_params = [{pipeline_mode = #tpu.pipeline_mode<synchronous>, transform_indices = @transform_0, window_bounds = array<i64: 8, 32>}, {pipeline_mode = #tpu.pipeline_mode<synchronous>, transform_indices = @transform_1, window_bounds = array<i64: 32, 256>}, {transform_indices = @transform_2, window_bounds = array<i64: 2, 256>}, {transform_indices = @transform_3, window_bounds = array<i64: 8, 256>}]} {
    %c0_i32 = arith.constant 0 : i32
    %0 = arith.cmpi eq, %arg1, %c0_i32 : i32
    %1 = arith.extui %0 : i1 to i32
    %c0_i32_0 = arith.constant 0 : i32
    %2 = arith.cmpi ne, %1, %c0_i32_0 : i32
    scf.if %2 {
      %cst_10 = arith.constant 0.000000e+00 : f32
      %13 = vector.broadcast %cst_10 : f32 to vector<8x256xf32>
      %c0_11 = arith.constant 0 : index
      %c0_12 = arith.constant 0 : index
      %14 = vector.load %arg6[%c0_11, %c0_12] : memref<8x256xf32, #tpu.memory_space<vmem>>, vector<8x256xf32>
      tpu.vector_store %arg6[%c0_11, %c0_12], %13 {strides = array<i32>} : memref<8x256xf32, #tpu.memory_space<vmem>>, vector<8x256xf32>,
    } else {
    }
    %c0 = arith.constant 0 : index
    %c0_1 = arith.constant 0 : index
    %3 = vector.load %arg6[%c0, %c0_1] : memref<8x256xf32, #tpu.memory_space<vmem>>, vector<8x256xf32>
    %c0_2 = arith.constant 0 : index
    %c0_3 = arith.constant 0 : index
    %4 = vector.load %arg2[%c0_2, %c0_3] : memref<8x32xf32, #tpu.memory_space<vmem>>, vector<8x32xf32>
    %5 = arith.truncf %4 : vector<8x32xf32> to vector<8x32xbf16>
    %c0_4 = arith.constant 0 : index
    %c0_5 = arith.constant 0 : index
    %6 = vector.load %arg3[%c0_4, %c0_5] : memref<32x256xbf16, #tpu.memory_space<vmem>>, vector<32x256xbf16>
    %cst = arith.constant dense<0.000000e+00> : vector<8x256xf32>
    %7 = tpu.matmul %5, %6, %cst {dimension_numbers = #tpu.dot_dimension_numbers<[1], [0], [0], [1], [0, 0, 1, 1], [], []>} : vector<8x32xbf16>, vector<32x256xbf16>, vector<8x256xf32> -> vector<8x256xf32>
    %8 = arith.addf %3, %7 : vector<8x256xf32>
    %c0_6 = arith.constant 0 : index
    %c0_7 = arith.constant 0 : index
    %9 = vector.load %arg6[%c0_6, %c0_7] : memref<8x256xf32, #tpu.memory_space<vmem>>, vector<8x256xf32>
    tpu.vector_store %arg6[%c0_6, %c0_7], %8 {strides = array<i32>} : memref<8x256xf32, #tpu.memory_space<vmem>>, vector<8x256xf32>,
    %c0_i32_8 = arith.constant 0 : i32
    %10 = arith.cmpi eq, %arg1, %c0_i32_8 : i32
    %11 = arith.extui %10 : i1 to i32
    %c0_i32_9 = arith.constant 0 : i32
    %12 = arith.cmpi ne, %11, %c0_i32_9 : i32
    scf.if %12 {
      %c0_10 = arith.constant 0 : index
      %c0_11 = arith.constant 0 : index
      %13 = vector.load %arg6[%c0_10, %c0_11] : memref<8x256xf32, #tpu.memory_space<vmem>>, vector<8x256xf32>
      %cst_12 = arith.constant dense<0.000000e+00> : vector<256xf32>
      %14 = vector.multi_reduction <add>, %13, %cst_12 [0] : vector<8x256xf32> to vector<256xf32>
      %15 = vector.shape_cast %14 : vector<256xf32> to vector<1x256xf32>
      %cst_13 = arith.constant 1.250000e-01 : f32
      %16 = vector.broadcast %cst_13 : f32 to vector<1x256xf32>
      %17 = arith.mulf %15, %16 : vector<1x256xf32>
      %18 = arith.mulf %13, %13 : vector<8x256xf32>
      %cst_14 = arith.constant dense<0.000000e+00> : vector<256xf32>
      %19 = vector.multi_reduction <add>, %18, %cst_14 [0] : vector<8x256xf32> to vector<256xf32>
      %20 = vector.shape_cast %19 : vector<256xf32> to vector<1x256xf32>
      %cst_15 = arith.constant 1.250000e-01 : f32
      %21 = vector.broadcast %cst_15 : f32 to vector<1x256xf32>
      %22 = arith.mulf %20, %21 : vector<1x256xf32>
      %23 = arith.mulf %17, %17 : vector<1x256xf32>
      %24 = arith.subf %22, %23 : vector<1x256xf32>
      %cst_16 = arith.constant 0.000000e+00 : f32
      %25 = vector.broadcast %cst_16 : f32 to vector<1x256xf32>
      %26 = arith.maximumf %24, %25 : vector<1x256xf32>
      %c0_17 = arith.constant 0 : index
      %c0_18 = arith.constant 0 : index
      %27 = vector.load %arg4[%c0_17, %c0_18] : memref<2x256xf32, #tpu.memory_space<vmem>>, vector<2x256xf32>
      %28 = vector.extract_strided_slice %27 {offsets = [0, 0], sizes = [1, 256], strides = [1, 1]} : vector<2x256xf32> to vector<1x256xf32>
      %29 = vector.extract_strided_slice %27 {offsets = [1, 0], sizes = [1, 256], strides = [1, 1]} : vector<2x256xf32> to vector<1x256xf32>
      %cst_19 = arith.constant 9.99999974E-6 : f32
      %30 = vector.broadcast %cst_19 : f32 to vector<1x256xf32>
      %31 = arith.addf %26, %30 : vector<1x256xf32>
      %32 = math.rsqrt %31 : vector<1x256xf32>
      %33 = arith.mulf %28, %32 : vector<1x256xf32>
      %34 = arith.mulf %17, %33 : vector<1x256xf32>
      %35 = arith.subf %29, %34 : vector<1x256xf32>
      %36 = vector.broadcast %33 : vector<1x256xf32> to vector<8x256xf32>
      %37 = arith.mulf %13, %36 : vector<8x256xf32>
      %38 = vector.broadcast %35 : vector<1x256xf32> to vector<8x256xf32>
      %39 = arith.addf %37, %38 : vector<8x256xf32>
      %cst_20 = arith.constant 0.000000e+00 : f32
      %40 = vector.broadcast %cst_20 : f32 to vector<8x256xf32>
      %41 = arith.maximumf %39, %40 : vector<8x256xf32>
      %42 = arith.truncf %41 : vector<8x256xf32> to vector<8x256xbf16>
      %c0_21 = arith.constant 0 : index
      %c0_22 = arith.constant 0 : index
      %43 = vector.load %arg5[%c0_21, %c0_22] : memref<8x256xbf16, #tpu.memory_space<vmem>>, vector<8x256xbf16>
      tpu.vector_store %arg5[%c0_21, %c0_22], %42 {strides = array<i32>} : memref<8x256xbf16, #tpu.memory_space<vmem>>, vector<8x256xbf16>,
    } else {
    }
    return
  }
  func.func @transform_0(%arg0: i32, %arg1: i32) -> (i32, i32) {
    %c0_i32 = arith.constant 0 : i32
    %c0_i32_0 = arith.constant 0 : i32
    return %c0_i32, %arg1 : i32, i32
  }
  func.func @transform_1(%arg0: i32, %arg1: i32) -> (i32, i32) {
    %c0_i32 = arith.constant 0 : i32
    return %arg1, %arg0 : i32, i32
  }
  func.func @transform_2(%arg0: i32, %arg1: i32) -> (i32, i32) {
    %c0_i32 = arith.constant 0 : i32
    %c0_i32_0 = arith.constant 0 : i32
    return %c0_i32, %arg0 : i32, i32
  }
  func.func @transform_3(%arg0: i32, %arg1: i32) -> (i32, i32) {
    %c0_i32 = arith.constant 0 : i32
    %c0_i32_0 = arith.constant 0 : i32
    return %c0_i32, %arg0 : i32, i32
  }
}

module attributes {stable_mosaic.version = 11 : i64} {
  func.func @_llb_linear_kernel(%arg0: i32, %arg1: i32, %arg2: memref<8x32xf32, #tpu.memory_space<vmem>>, %arg3: memref<32x256xbf16, #tpu.memory_space<vmem>>, %arg4: memref<2x256xf32, #tpu.memory_space<vmem>>, %arg5: memref<8x256xbf16, #tpu.memory_space<vmem>>, %arg6: memref<8x256xf32, #tpu.memory_space<vmem>>) attributes {dimension_semantics = [#tpu.dimension_semantics<parallel>, #tpu.dimension_semantics<arbitrary>], iteration_bounds = array<i64: 1, 1>, scalar_prefetch = 0 : i64, scratch_operands = 1 : i64, tpu.core_type = #tpu.core_type<tc>, window_params = [{transform_indices = @transform_0, window_bounds = array<i64: 8, 32>}, {transform_indices = @transform_1, window_bounds = array<i64: 32, 256>}, {transform_indices = @transform_2, window_bounds = array<i64: 2, 256>}, {transform_indices = @transform_3, window_bounds = array<i64: 8, 256>}]} {
    %c0_i32 = arith.constant 0 : i32
    %0 = arith.cmpi eq, %arg1, %c0_i32 : i32
    %1 = arith.extui %0 : i1 to i32
    %c0_i32_0 = arith.constant 0 : i32
    %2 = arith.cmpi ne, %1, %c0_i32_0 : i32
    scf.if %2 {
      %cst_10 = arith.constant 0.000000e+00 : f32
      %13 = vector.broadcast %cst_10 : f32 to vector<8x256xf32>
      %c0_11 = arith.constant 0 : index
      %c0_12 = arith.constant 0 : index
      %14 = vector.load %arg6[%c0_11, %c0_12] : memref<8x256xf32, #tpu.memory_space<vmem>>, vector<8x256xf32>
      tpu.vector_store %arg6[%c0_11, %c0_12], %13 {strides = array<i32>} : memref<8x256xf32, #tpu.memory_space<vmem>>, vector<8x256xf32>,
    } else {
    }
    %c0 = arith.constant 0 : index
    %c0_1 = arith.constant 0 : index
    %3 = vector.load %arg6[%c0, %c0_1] : memref<8x256xf32, #tpu.memory_space<vmem>>, vector<8x256xf32>
    %c0_2 = arith.constant 0 : index
    %c0_3 = arith.constant 0 : index
    %4 = vector.load %arg2[%c0_2, %c0_3] : memref<8x32xf32, #tpu.memory_space<vmem>>, vector<8x32xf32>
    %5 = arith.truncf %4 : vector<8x32xf32> to vector<8x32xbf16>
    %c0_4 = arith.constant 0 : index
    %c0_5 = arith.constant 0 : index
    %6 = vector.load %arg3[%c0_4, %c0_5] : memref<32x256xbf16, #tpu.memory_space<vmem>>, vector<32x256xbf16>
    %cst = arith.constant dense<0.000000e+00> : vector<8x256xf32>
    %7 = tpu.matmul %5, %6, %cst {dimension_numbers = #tpu.dot_dimension_numbers<[1], [0], [0], [1], [0, 0, 1, 1], [], []>} : vector<8x32xbf16>, vector<32x256xbf16>, vector<8x256xf32> -> vector<8x256xf32>
    %8 = arith.addf %3, %7 : vector<8x256xf32>
    %c0_6 = arith.constant 0 : index
    %c0_7 = arith.constant 0 : index
    %9 = vector.load %arg6[%c0_6, %c0_7] : memref<8x256xf32, #tpu.memory_space<vmem>>, vector<8x256xf32>
    tpu.vector_store %arg6[%c0_6, %c0_7], %8 {strides = array<i32>} : memref<8x256xf32, #tpu.memory_space<vmem>>, vector<8x256xf32>,
    %c0_i32_8 = arith.constant 0 : i32
    %10 = arith.cmpi eq, %arg1, %c0_i32_8 : i32
    %11 = arith.extui %10 : i1 to i32
    %c0_i32_9 = arith.constant 0 : i32
    %12 = arith.cmpi ne, %11, %c0_i32_9 : i32
    scf.if %12 {
      %c0_10 = arith.constant 0 : index
      %c0_11 = arith.constant 0 : index
      %13 = vector.load %arg6[%c0_10, %c0_11] : memref<8x256xf32, #tpu.memory_space<vmem>>, vector<8x256xf32>
      %cst_12 = arith.constant dense<0.000000e+00> : vector<256xf32>
      %14 = vector.multi_reduction <add>, %13, %cst_12 [0] : vector<8x256xf32> to vector<256xf32>
      %15 = vector.shape_cast %14 : vector<256xf32> to vector<1x256xf32>
      %cst_13 = arith.constant 1.250000e-01 : f32
      %16 = vector.broadcast %cst_13 : f32 to vector<1x256xf32>
      %17 = arith.mulf %15, %16 : vector<1x256xf32>
      %18 = arith.mulf %13, %13 : vector<8x256xf32>
      %cst_14 = arith.constant dense<0.000000e+00> : vector<256xf32>
      %19 = vector.multi_reduction <add>, %18, %cst_14 [0] : vector<8x256xf32> to vector<256xf32>
      %20 = vector.shape_cast %19 : vector<256xf32> to vector<1x256xf32>
      %cst_15 = arith.constant 1.250000e-01 : f32
      %21 = vector.broadcast %cst_15 : f32 to vector<1x256xf32>
      %22 = arith.mulf %20, %21 : vector<1x256xf32>
      %23 = arith.mulf %17, %17 : vector<1x256xf32>
      %24 = arith.subf %22, %23 : vector<1x256xf32>
      %cst_16 = arith.constant 0.000000e+00 : f32
      %25 = vector.broadcast %cst_16 : f32 to vector<1x256xf32>
      %26 = arith.maximumf %24, %25 : vector<1x256xf32>
      %c0_17 = arith.constant 0 : index
      %c0_18 = arith.constant 0 : index
      %27 = vector.load %arg4[%c0_17, %c0_18] : memref<2x256xf32, #tpu.memory_space<vmem>>, vector<2x256xf32>
      %28 = vector.extract_strided_slice %27 {offsets = [0, 0], sizes = [1, 256], strides = [1, 1]} : vector<2x256xf32> to vector<1x256xf32>
      %29 = vector.extract_strided_slice %27 {offsets = [1, 0], sizes = [1, 256], strides = [1, 1]} : vector<2x256xf32> to vector<1x256xf32>
      %cst_19 = arith.constant 9.99999974E-6 : f32
      %30 = vector.broadcast %cst_19 : f32 to vector<1x256xf32>
      %31 = arith.addf %26, %30 : vector<1x256xf32>
      %32 = math.rsqrt %31 : vector<1x256xf32>
      %33 = arith.mulf %28, %32 : vector<1x256xf32>
      %34 = arith.mulf %17, %33 : vector<1x256xf32>
      %35 = arith.subf %29, %34 : vector<1x256xf32>
      %36 = vector.broadcast %33 : vector<1x256xf32> to vector<8x256xf32>
      %37 = arith.mulf %13, %36 : vector<8x256xf32>
      %38 = vector.broadcast %35 : vector<1x256xf32> to vector<8x256xf32>
      %39 = arith.addf %37, %38 : vector<8x256xf32>
      %cst_20 = arith.constant 0.000000e+00 : f32
      %40 = vector.broadcast %cst_20 : f32 to vector<8x256xf32>
      %41 = arith.maximumf %39, %40 : vector<8x256xf32>
      %42 = arith.truncf %41 : vector<8x256xf32> to vector<8x256xbf16>
      %c0_21 = arith.constant 0 : index
      %c0_22 = arith.constant 0 : index
      %43 = vector.load %arg5[%c0_21, %c0_22] : memref<8x256xbf16, #tpu.memory_space<vmem>>, vector<8x256xbf16>
      tpu.vector_store %arg5[%c0_21, %c0_22], %42 {strides = array<i32>} : memref<8x256xbf16, #tpu.memory_space<vmem>>, vector<8x256xbf16>,
    } else {
    }
    return
  }
  func.func @transform_0(%arg0: i32, %arg1: i32) -> (i32, i32) {
    %c0_i32 = arith.constant 0 : i32
    %c0_i32_0 = arith.constant 0 : i32
    return %c0_i32, %arg1 : i32, i32
  }
  func.func @transform_1(%arg0: i32, %arg1: i32) -> (i32, i32) {
    %c0_i32 = arith.constant 0 : i32
    return %arg1, %arg0 : i32, i32
  }
  func.func @transform_2(%arg0: i32, %arg1: i32) -> (i32, i32) {
    %c0_i32 = arith.constant 0 : i32
    %c0_i32_0 = arith.constant 0 : i32
    return %c0_i32, %arg0 : i32, i32
  }
  func.func @transform_3(%arg0: i32, %arg1: i32) -> (i32, i32) {
    %c0_i32 = arith.constant 0 : i32
    %c0_i32_0 = arith.constant 0 : i32
    return %c0_i32, %arg0 : i32, i32
  }
}

</mosaic_0001>

<llo_original>
// kernel: tpu_custom_call.1
$region0: #{tpu_custom_call.1}
  #allocation0 [shape = 'u32[]', space=smem, size = 0x4, offset = 0x4, fixed_abs, tag = 'smem constant byte address 0x4 - core index']
  #allocation1 [shape = 'u32[144,128]{1,0:T(1,128)}', space=vmem, size = 0x12000, scoped, tag = 'internal scratch']
  #allocation2 [shape = 'f32[8,256]{1,0:T(8,128)}', space=vmem, size = 0x2000, scoped, tag = 'scratch operand']
  %s0 = inlined_call_operand.hbm [shape: f32[8,32], index: 0, kind: input, shape index: {}]
  %s1 = inlined_call_operand.hbm [shape: bf16[32,256], index: 1, kind: input, shape index: {}]
  %s2 = inlined_call_operand.vmem [shape: f32[2,256], index: 2, kind: input, shape index: {}]
  %s3 = inlined_call_operand.hbm [shape: bf16[8,256], index: 3, kind: output, shape index: {}]
  %s4 = sld [smem:[#allocation0]]
  $region38: #{tpu_custom_call.1} parent=0
    _
  %s6 = ssub.s32 1, %s4
  %s7 = scalar_select 0, %s6, %s4
  $region1: #{tpu_custom_call.1} parent=0
    #allocation3 [shape = 'u8[4096]{0}', space=vmem, size = 0x1000, scoped, tag = 'input window, operand 0, single buffered']
    #allocation4 [shape = 's32[1]{0}', space=sflag, size = 0x4, scoped, tag = 'scoped memory for tpu_custom_call.1']
    #allocation5 [shape = 's32[1]{0}', space=sflag, size = 0x4, scoped, tag = 'scoped memory for tpu_custom_call.1']
    #allocation6 [shape = 'u8[16384]{0}', space=vmem, size = 0x4000, scoped, tag = 'input window, operand 1, single buffered']
    #allocation7 [shape = 's32[1]{0}', space=sflag, size = 0x4, scoped, tag = 'scoped memory for tpu_custom_call.1']
    #allocation8 [shape = 'u8[4096]{0}', space=vmem, size = 0x1000, scoped, tag = 'output window, operand 0, single buffered']
    %8 = vsyncpa [#allocation4], 0
    %9 = vsyncpa [#allocation7], 0
    %10 = vsyncpa [#allocation5], 0
    // Predicated region
    $region2: #{tpu_custom_call.1} parent=1 // pred_check
      _
    $region3: #{tpu_custom_call.1} parent=1 // pred_check_branch
      %12 = sbr.rel (0) target = $region5
    $region4: #{tpu_custom_call.1} parent=1 // pred_region
      %s14 = ssub.s32 128, 128
      %15 = vsyncadd [#allocation4], %s14
      %s17 = sshll.u32 [#allocation3], 4
      %s18 = int_to_ptr.vmem [resolvable:$true] %s17
      %20 = dma.hbm_to_vmem [thread:$0]  %s0, 128, %s18, [#allocation4]
    $region5: #{tpu_custom_call.1} parent=1 // pred_fallthru
      _
    // Predicated region
    $region6: #{tpu_custom_call.1} parent=1 // pred_check
      _
    $region7: #{tpu_custom_call.1} parent=1 // pred_check_branch
      %22 = sbr.rel (0) target = $region9
    $region8: #{tpu_custom_call.1} parent=1 // pred_region
      %s24 = ssub.s32 512, 512
      %25 = vsyncadd [#allocation7], %s24
      %s26 = sshll.u32 [#allocation6], 4
      %s27 = int_to_ptr.vmem [resolvable:$true] %s26
      %32 = dma.hbm_to_vmem [thread:$0]  %s1, 512, %s27, [#allocation7], 128, 128, 8
    $region9: #{tpu_custom_call.1} parent=1 // pred_fallthru
      _
    // Predicated region
    $region10: #{tpu_custom_call.1} parent=1 // pred_check
      _
    $region11: #{tpu_custom_call.1} parent=1 // pred_check_branch
      %34 = sbr.rel (0) target = $region13
    $region12: #{tpu_custom_call.1} parent=1 // pred_region
      _
    $region13: #{tpu_custom_call.1} parent=1 // pred_fallthru
      _
    // Predicated region
    $region14: #{tpu_custom_call.1} parent=1 // pred_check
      _
    $region15: #{tpu_custom_call.1} parent=1 // pred_check_branch
      %36 = sbr.rel (0) target = $region17
    $region16: #{tpu_custom_call.1} parent=1 // pred_region
      %37 = dma.done [#allocation4], 128
    $region17: #{tpu_custom_call.1} parent=1 // pred_fallthru
      _
    // Predicated region
    $region18: #{tpu_custom_call.1} parent=1 // pred_check
      _
    $region19: #{tpu_custom_call.1} parent=1 // pred_check_branch
      %39 = sbr.rel (0) target = $region21
    $region20: #{tpu_custom_call.1} parent=1 // pred_region
      %40 = dma.done [#allocation7], 512
    $region21: #{tpu_custom_call.1} parent=1 // pred_fallthru
      _
    %p42 = scmp.eq.s32.totalorder 0, 0
    // Predicated region
    $region22: #{tpu_custom_call.1} parent=1 // pred_check
      %p43 = pneg %p42
    $region23: #{tpu_custom_call.1} parent=1 // pred_check_branch
      %45 = sbr.rel (%p43) target = $region25
    $region24: #{tpu_custom_call.1} parent=1 // pred_region
      %46 = vst [vmem:[#allocation2] sm:$0xff] 0.0
      %47 = vst [vmem:[#allocation2 + $0x8] sm:$0xff] 0.0
    $region25: #{tpu_custom_call.1} parent=1 // pred_fallthru
      _
    %v48 = vld [vmem:[#allocation2] sm:$0xff]
    %v49 = vld [vmem:[#allocation2 + $0x8] sm:$0xff]
    %v50 = vld [vmem:[#allocation3] sm:$0xff]
    %v51 = vpack.c.bf16 %v50, %v50
    %v52 = vld [vmem:[#allocation6] sm:$0xff]
    %v53 = vld [vmem:[#allocation6 + $0x8] sm:$0xff]
    %v54 = vld [vmem:[#allocation6 + $0x10] sm:$0xff]
    %v55 = vld [vmem:[#allocation6 + $0x18] sm:$0xff]
    %v60 = vunpack.c.l.b16 %v52
    %v61 = vunpack.c.h.b16 %v52
    %v62 = vunpack.c.l.b16 %v53
    %v63 = vunpack.c.h.b16 %v53
    %v64 = vunpack.c.l.b16 %v54
    %v65 = vunpack.c.h.b16 %v54
    %v66 = vunpack.c.l.b16 %v55
    %v67 = vunpack.c.h.b16 %v55
    %v68 = vpack.c.b16 %v62, %v60
    %v69 = vpack.c.b16 %v63, %v61
    %v70 = vpack.c.b16 %v66, %v64
    %v71 = vpack.c.b16 %v67, %v65
    %vm76 = vcmask 261120
    %v78 = vsel %vm76, %v51, 0
    %80 = vmatprep.subr.bf16.mxu0 %v69
    %81 = vmatpush1.bf16.msra.mxu0 %v68
    %82 = vmatprep.subr.bf16.mxu0 %v71
    %83 = vmatpush1.bf16.msra.mxu0 %v70
    %84 = vmatprep.subr.bf16.mxu0 0
    %85 = vmatpush1.bf16.msra.mxu0 0
    %86 = vmatprep.subr.bf16.mxu0 0
    %87 = vmatpush1.bf16.msra.mxu0 0
    %88 = vmatprep.subr.bf16.mxu0 0
    %89 = vmatpush1.bf16.msra.mxu0 0
    %90 = vmatprep.subr.bf16.mxu0 0
    %91 = vmatpush1.bf16.msra.mxu0 0
    %92 = vmatprep.subr.bf16.mxu0 0
    %93 = vmatpush1.bf16.msra.mxu0 0
    %94 = vmatprep.subr.bf16.mxu0 0
    %95 = vmatpush1.bf16.msra.mxu0 0
    %96 = vmatprep.subr.bf16.mxu0 0
    %97 = vmatpush1.bf16.msra.mxu0 0
    %98 = vmatprep.subr.bf16.mxu0 0
    %99 = vmatpush1.bf16.msra.mxu0 0
    %100 = vmatprep.subr.bf16.mxu0 0
    %101 = vmatpush1.bf16.msra.mxu0 0
    %102 = vmatprep.subr.bf16.mxu0 0
    %103 = vmatpush1.bf16.msra.mxu0 0
    %104 = vmatprep.subr.bf16.mxu0 0
    %105 = vmatpush1.bf16.msra.mxu0 0
    %106 = vmatprep.subr.bf16.mxu0 0
    %107 = vmatpush1.bf16.msra.mxu0 0
    %108 = vmatprep.subr.bf16.mxu0 0
    %109 = vmatpush1.bf16.msra.mxu0 0
    %110 = vmatprep.subr.bf16.mxu0 0
    %111 = vmatpush1.bf16.msra.mxu0 0
    %112 = vmatprep.mubr.bf16.mxu0 0
    %113 = vmatmul.mubr.bf16.gmra.mrb[0].mxu0 %v78
    %v114 = vpop.f32.mrb[0].mxu0
    %v115 = vadd.f32 0.0, %v114
    %v116 = vpop.f32.mrb[0].mxu0
    %v117 = vadd.f32 0.0, %v116
    %v118 = vpop.f32.mrb[0].mxu0
    %v119 = vpop.f32.mrb[0].mxu0
    %120 = vdwg.mxu0
    %v121 = vadd.f32 %v48, %v115
    %v122 = vadd.f32 %v49, %v117
    %123 = vst [vmem:[#allocation2] sm:$0xff] %v121
    %124 = vst [vmem:[#allocation2 + $0x8] sm:$0xff] %v122
    // Predicated region
    $region26: #{tpu_custom_call.1} parent=1 // pred_check
      %p125 = pneg %p42
    $region27: #{tpu_custom_call.1} parent=1 // pred_check_branch
      %127 = sbr.rel (%p125) target = $region29
    $region28: #{tpu_custom_call.1} parent=1 // pred_region
      %v128 = vld [vmem:[#allocation2] sm:$0xff]
      %v129 = vld [vmem:[#allocation2 + $0x8] sm:$0xff]
      %v130 = vrot.slane %v128, 4
      %v131 = vadd.f32 %v128, %v130
      %v132 = vrot.slane %v131, 2
      %v133 = vadd.f32 %v131, %v132
      %v134 = vrot.slane %v133, 1
      %v135 = vadd.f32 %v133, %v134
      %v136 = vrot.slane %v129, 4
      %v137 = vadd.f32 %v129, %v136
      %v138 = vrot.slane %v137, 2
      %v139 = vadd.f32 %v137, %v138
      %v140 = vrot.slane %v139, 1
      %v141 = vadd.f32 %v139, %v140
      %v142 = vmul.f32 %v135, 0.125
      %v143 = vmul.f32 %v141, 0.125
      %v144 = vmul.f32 %v128, %v128
      %v145 = vmul.f32 %v129, %v129
      %v146 = vrot.slane %v144, 4
      %v147 = vadd.f32 %v144, %v146
      %v148 = vrot.slane %v147, 2
      %v149 = vadd.f32 %v147, %v148
      %v150 = vrot.slane %v149, 1
      %v151 = vadd.f32 %v149, %v150
      %v152 = vrot.slane %v145, 4
      %v153 = vadd.f32 %v145, %v152
      %v154 = vrot.slane %v153, 2
      %v155 = vadd.f32 %v153, %v154
      %v156 = vrot.slane %v155, 1
      %v157 = vadd.f32 %v155, %v156
      %v158 = vmul.f32 %v151, 0.125
      %v159 = vmul.f32 %v157, 0.125
      %v160 = vmul.f32 %v142, %v142
      %v161 = vmul.f32 %v143, %v143
      %v162 = vsub.f32 %v158, %v160
      %v163 = vsub.f32 %v159, %v161
      %v164 = vmax.f32 %v162, 0.0
      %v165 = vmax.f32 %v163, 0.0
      %v166 = vld [vmem:[%s2] sm:$0xf]
      %v167 = vadd.f32 %v164, 1e-05
      %v168 = vadd.f32 %v165, 1e-05
      %v169 = vrsqrt.pop %v167
      %v170 = vrsqrt.pop %v168
      %v173 = vcombine.low %v169, %v170
      %v175 = vunpack.c.l.s4 1983009808
      %v176 = vunpack.c.0.s8 %v175
      %v177 = vlaneseq
      %v178 = vshrl.u32 %v177, 7
      %v179 = vsub.s32 %v176, %v178
      %v180 = vrot.slane %v173, %v179
      %v182 = vmul.f32 %v166, %v180
      %v184 = vlaneseq
      %v185 = vshrl.u32 %v184, 7
      %v186 = vsub.s32 0, %v185
      %v187 = vrot.slane %v182, %v186
      %v188 = vlaneseq
      %v189 = vshrl.u32 %v188, 7
      %v190 = vsub.s32 2, %v189
      %v191 = vrot.slane %v182, %v190
      %v194 = vmul.f32 %v142, %v187
      %v195 = vmul.f32 %v143, %v191
      %v198 = vcombine.low %v194, %v195
      %v200 = vunpack.c.l.s4 1983009808
      %v201 = vunpack.c.0.s8 %v200
      %v202 = vlaneseq
      %v203 = vshrl.u32 %v202, 7
      %v204 = vsub.s32 %v201, %v203
      %v205 = vrot.slane %v198, %v204
      %v206 = vrot.slane %v205, 7
      %v208 = vsub.f32 %v166, %v206
      %v209 = vlaneseq
      %v210 = vshrl.u32 %v209, 7
      %v211 = vsub.s32 0, %v210
      %v212 = vrot.slane %v187, %v211
      %v213 = vlaneseq
      %v214 = vshrl.u32 %v213, 7
      %v215 = vsub.s32 0, %v214
      %v216 = vrot.slane %v191, %v215
      %v217 = vmul.f32 %v128, %v212
      %v218 = vmul.f32 %v129, %v216
      %v220 = vlaneseq
      %v221 = vshrl.u32 %v220, 7
      %v222 = vsub.s32 1, %v221
      %v223 = vrot.slane %v208, %v222
      %v224 = vlaneseq
      %v225 = vshrl.u32 %v224, 7
      %v226 = vsub.s32 3, %v225
      %v227 = vrot.slane %v208, %v226
      %v230 = vlaneseq
      %v231 = vshrl.u32 %v230, 7
      %v232 = vsub.s32 1, %v231
      %v233 = vrot.slane %v223, %v232
      %v234 = vlaneseq
      %v235 = vshrl.u32 %v234, 7
      %v236 = vsub.s32 1, %v235
      %v237 = vrot.slane %v227, %v236
      %v238 = vadd.f32 %v217, %v233
      %v239 = vadd.f32 %v218, %v237
      %v240 = vmax.f32 %v238, 0.0
      %v241 = vmax.f32 %v239, 0.0
      %v242 = vpack.c.bf16 %v240, %v240
      %v243 = vpack.c.bf16 %v241, %v241
      %v246 = vunpack.c.l.b16 %v242
      %v247 = vunpack.c.l.b16 %v243
      %v248 = vpack.c.b16 %v247, %v246
      %250 = vst [vmem:[#allocation8] sm:$0xff] %v248
    $region29: #{tpu_custom_call.1} parent=1 // pred_fallthru
      _
    // Predicated region
    $region30: #{tpu_custom_call.1} parent=1 // pred_check
      _
    $region31: #{tpu_custom_call.1} parent=1 // pred_check_branch
      %252 = sbr.rel (0) target = $region33
    $region32: #{tpu_custom_call.1} parent=1 // pred_region
      %s254 = ssub.s32 128, 128
      %255 = vsyncadd [#allocation5], %s254
      %s257 = sshll.u32 [#allocation8], 4
      %s258 = int_to_ptr.vmem [resolvable:$true] %s257
      %260 = dma.vmem_to_hbm [thread:$0]  %s258, 128, %s3, [#allocation5]
    $region33: #{tpu_custom_call.1} parent=1 // pred_fallthru
      _
    // Predicated region
    $region34: #{tpu_custom_call.1} parent=1 // pred_check
      _
    $region35: #{tpu_custom_call.1} parent=1 // pred_check_branch
      %262 = sbr.rel (0) target = $region37
    $region36: #{tpu_custom_call.1} parent=1 // pred_region
      %263 = dma.done [#allocation5], 128
    $region37: #{tpu_custom_call.1} parent=1 // pred_fallthru
      _
    %264 = vsyncpa [#allocation4], 1
    %265 = vsyncpa [#allocation7], 1
    %266 = vsyncpa [#allocation5], 1

// kernel: tpu_custom_call.1
$region0: #{tpu_custom_call.1}
  #allocation0 [shape = 'u32[]', space=smem, size = 0x4, offset = 0x4, fixed_abs, tag = 'smem constant byte address 0x4 - core index']
  #allocation1 [shape = 'u32[144,128]{1,0:T(1,128)}', space=vmem, size = 0x12000, scoped, tag = 'internal scratch']
  #allocation2 [shape = 'f32[8,256]{1,0:T(8,128)}', space=vmem, size = 0x2000, scoped, tag = 'scratch operand']
  %s0 = inlined_call_operand.hbm [shape: f32[8,32], index: 0, kind: input, shape index: {}]
  %s1 = inlined_call_operand.hbm [shape: bf16[32,256], index: 1, kind: input, shape index: {}]
  %s2 = inlined_call_operand.vmem [shape: f32[2,256], index: 2, kind: input, shape index: {}]
  %s3 = inlined_call_operand.hbm [shape: bf16[8,256], index: 3, kind: output, shape index: {}]
  %s4 = sld [smem:[#allocation0]]
  $region38: #{tpu_custom_call.1} parent=0
    _
  %s6 = ssub.s32 1, %s4
  %s7 = scalar_select 0, %s6, %s4
  $region1: #{tpu_custom_call.1} parent=0
    #allocation3 [shape = 'u8[4096]{0}', space=vmem, size = 0x1000, scoped, tag = 'input window, operand 0, single buffered']
    #allocation4 [shape = 's32[1]{0}', space=sflag, size = 0x4, scoped, tag = 'scoped memory for tpu_custom_call.1']
    #allocation5 [shape = 's32[1]{0}', space=sflag, size = 0x4, scoped, tag = 'scoped memory for tpu_custom_call.1']
    #allocation6 [shape = 'u8[16384]{0}', space=vmem, size = 0x4000, scoped, tag = 'input window, operand 1, single buffered']
    #allocation7 [shape = 's32[1]{0}', space=sflag, size = 0x4, scoped, tag = 'scoped memory for tpu_custom_call.1']
    #allocation8 [shape = 'u8[4096]{0}', space=vmem, size = 0x1000, scoped, tag = 'output window, operand 0, single buffered']
    %8 = vsyncpa [#allocation4], 0
    %9 = vsyncpa [#allocation7], 0
    %10 = vsyncpa [#allocation5], 0
    // Predicated region
    $region2: #{tpu_custom_call.1} parent=1 // pred_check
      _
    $region3: #{tpu_custom_call.1} parent=1 // pred_check_branch
      %12 = sbr.rel (0) target = $region5
    $region4: #{tpu_custom_call.1} parent=1 // pred_region
      %s14 = ssub.s32 128, 128
      %15 = vsyncadd [#allocation4], %s14
      %s17 = sshll.u32 [#allocation3], 4
      %s18 = int_to_ptr.vmem [resolvable:$true] %s17
      %20 = dma.hbm_to_vmem [thread:$0]  %s0, 128, %s18, [#allocation4]
    $region5: #{tpu_custom_call.1} parent=1 // pred_fallthru
      _
    // Predicated region
    $region6: #{tpu_custom_call.1} parent=1 // pred_check
      _
    $region7: #{tpu_custom_call.1} parent=1 // pred_check_branch
      %22 = sbr.rel (0) target = $region9
    $region8: #{tpu_custom_call.1} parent=1 // pred_region
      %s24 = ssub.s32 512, 512
      %25 = vsyncadd [#allocation7], %s24
      %s26 = sshll.u32 [#allocation6], 4
      %s27 = int_to_ptr.vmem [resolvable:$true] %s26
      %32 = dma.hbm_to_vmem [thread:$0]  %s1, 512, %s27, [#allocation7], 128, 128, 8
    $region9: #{tpu_custom_call.1} parent=1 // pred_fallthru
      _
    // Predicated region
    $region10: #{tpu_custom_call.1} parent=1 // pred_check
      _
    $region11: #{tpu_custom_call.1} parent=1 // pred_check_branch
      %34 = sbr.rel (0) target = $region13
    $region12: #{tpu_custom_call.1} parent=1 // pred_region
      _
    $region13: #{tpu_custom_call.1} parent=1 // pred_fallthru
      _
    // Predicated region
    $region14: #{tpu_custom_call.1} parent=1 // pred_check
      _
    $region15: #{tpu_custom_call.1} parent=1 // pred_check_branch
      %36 = sbr.rel (0) target = $region17
    $region16: #{tpu_custom_call.1} parent=1 // pred_region
      %37 = dma.done [#allocation4], 128
    $region17: #{tpu_custom_call.1} parent=1 // pred_fallthru
      _
    // Predicated region
    $region18: #{tpu_custom_call.1} parent=1 // pred_check
      _
    $region19: #{tpu_custom_call.1} parent=1 // pred_check_branch
      %39 = sbr.rel (0) target = $region21
    $region20: #{tpu_custom_call.1} parent=1 // pred_region
      %40 = dma.done [#allocation7], 512
    $region21: #{tpu_custom_call.1} parent=1 // pred_fallthru
      _
    %p42 = scmp.eq.s32.totalorder 0, 0
    // Predicated region
    $region22: #{tpu_custom_call.1} parent=1 // pred_check
      %p43 = pneg %p42
    $region23: #{tpu_custom_call.1} parent=1 // pred_check_branch
      %45 = sbr.rel (%p43) target = $region25
    $region24: #{tpu_custom_call.1} parent=1 // pred_region
      %46 = vst [vmem:[#allocation2] sm:$0xff] 0.0
      %47 = vst [vmem:[#allocation2 + $0x8] sm:$0xff] 0.0
    $region25: #{tpu_custom_call.1} parent=1 // pred_fallthru
      _
    %v48 = vld [vmem:[#allocation2] sm:$0xff]
    %v49 = vld [vmem:[#allocation2 + $0x8] sm:$0xff]
    %v50 = vld [vmem:[#allocation3] sm:$0xff]
    %v51 = vpack.c.bf16 %v50, %v50
    %v52 = vld [vmem:[#allocation6] sm:$0xff]
    %v53 = vld [vmem:[#allocation6 + $0x8] sm:$0xff]
    %v54 = vld [vmem:[#allocation6 + $0x10] sm:$0xff]
    %v55 = vld [vmem:[#allocation6 + $0x18] sm:$0xff]
    %v60 = vunpack.c.l.b16 %v52
    %v61 = vunpack.c.h.b16 %v52
    %v62 = vunpack.c.l.b16 %v53
    %v63 = vunpack.c.h.b16 %v53
    %v64 = vunpack.c.l.b16 %v54
    %v65 = vunpack.c.h.b16 %v54
    %v66 = vunpack.c.l.b16 %v55
    %v67 = vunpack.c.h.b16 %v55
    %v68 = vpack.c.b16 %v62, %v60
    %v69 = vpack.c.b16 %v63, %v61
    %v70 = vpack.c.b16 %v66, %v64
    %v71 = vpack.c.b16 %v67, %v65
    %vm76 = vcmask 261120
    %v78 = vsel %vm76, %v51, 0
    %80 = vmatprep.subr.bf16.mxu0 %v69
    %81 = vmatpush1.bf16.msra.mxu0 %v68
    %82 = vmatprep.subr.bf16.mxu0 %v71
    %83 = vmatpush1.bf16.msra.mxu0 %v70
    %84 = vmatprep.subr.bf16.mxu0 0
    %85 = vmatpush1.bf16.msra.mxu0 0
    %86 = vmatprep.subr.bf16.mxu0 0
    %87 = vmatpush1.bf16.msra.mxu0 0
    %88 = vmatprep.subr.bf16.mxu0 0
    %89 = vmatpush1.bf16.msra.mxu0 0
    %90 = vmatprep.subr.bf16.mxu0 0
    %91 = vmatpush1.bf16.msra.mxu0 0
    %92 = vmatprep.subr.bf16.mxu0 0
    %93 = vmatpush1.bf16.msra.mxu0 0
    %94 = vmatprep.subr.bf16.mxu0 0
    %95 = vmatpush1.bf16.msra.mxu0 0
    %96 = vmatprep.subr.bf16.mxu0 0
    %97 = vmatpush1.bf16.msra.mxu0 0
    %98 = vmatprep.subr.bf16.mxu0 0
    %99 = vmatpush1.bf16.msra.mxu0 0
    %100 = vmatprep.subr.bf16.mxu0 0
    %101 = vmatpush1.bf16.msra.mxu0 0
    %102 = vmatprep.subr.bf16.mxu0 0
    %103 = vmatpush1.bf16.msra.mxu0 0
    %104 = vmatprep.subr.bf16.mxu0 0
    %105 = vmatpush1.bf16.msra.mxu0 0
    %106 = vmatprep.subr.bf16.mxu0 0
    %107 = vmatpush1.bf16.msra.mxu0 0
    %108 = vmatprep.subr.bf16.mxu0 0
    %109 = vmatpush1.bf16.msra.mxu0 0
    %110 = vmatprep.subr.bf16.mxu0 0
    %111 = vmatpush1.bf16.msra.mxu0 0
    %112 = vmatprep.mubr.bf16.mxu0 0
    %113 = vmatmul.mubr.bf16.gmra.mrb[0].mxu0 %v78
    %v114 = vpop.f32.mrb[0].mxu0
    %v115 = vadd.f32 0.0, %v114
    %v116 = vpop.f32.mrb[0].mxu0
    %v117 = vadd.f32 0.0, %v116
    %v118 = vpop.f32.mrb[0].mxu0
    %v119 = vpop.f32.mrb[0].mxu0
    %120 = vdwg.mxu0
    %v121 = vadd.f32 %v48, %v115
    %v122 = vadd.f32 %v49, %v117
    %123 = vst [vmem:[#allocation2] sm:$0xff] %v121
    %124 = vst [vmem:[#allocation2 + $0x8] sm:$0xff] %v122
    // Predicated region
    $region26: #{tpu_custom_call.1} parent=1 // pred_check
      %p125 = pneg %p42
    $region27: #{tpu_custom_call.1} parent=1 // pred_check_branch
      %127 = sbr.rel (%p125) target = $region29
    $region28: #{tpu_custom_call.1} parent=1 // pred_region
      %v128 = vld [vmem:[#allocation2] sm:$0xff]
      %v129 = vld [vmem:[#allocation2 + $0x8] sm:$0xff]
      %v130 = vrot.slane %v128, 4
      %v131 = vadd.f32 %v128, %v130
      %v132 = vrot.slane %v131, 2
      %v133 = vadd.f32 %v131, %v132
      %v134 = vrot.slane %v133, 1
      %v135 = vadd.f32 %v133, %v134
      %v136 = vrot.slane %v129, 4
      %v137 = vadd.f32 %v129, %v136
      %v138 = vrot.slane %v137, 2
      %v139 = vadd.f32 %v137, %v138
      %v140 = vrot.slane %v139, 1
      %v141 = vadd.f32 %v139, %v140
      %v142 = vmul.f32 %v135, 0.125
      %v143 = vmul.f32 %v141, 0.125
      %v144 = vmul.f32 %v128, %v128
      %v145 = vmul.f32 %v129, %v129
      %v146 = vrot.slane %v144, 4
      %v147 = vadd.f32 %v144, %v146
      %v148 = vrot.slane %v147, 2
      %v149 = vadd.f32 %v147, %v148
      %v150 = vrot.slane %v149, 1
      %v151 = vadd.f32 %v149, %v150
      %v152 = vrot.slane %v145, 4
      %v153 = vadd.f32 %v145, %v152
      %v154 = vrot.slane %v153, 2
      %v155 = vadd.f32 %v153, %v154
      %v156 = vrot.slane %v155, 1
      %v157 = vadd.f32 %v155, %v156
      %v158 = vmul.f32 %v151, 0.125
      %v159 = vmul.f32 %v157, 0.125
      %v160 = vmul.f32 %v142, %v142
      %v161 = vmul.f32 %v143, %v143
      %v162 = vsub.f32 %v158, %v160
      %v163 = vsub.f32 %v159, %v161
      %v164 = vmax.f32 %v162, 0.0
      %v165 = vmax.f32 %v163, 0.0
      %v166 = vld [vmem:[%s2] sm:$0xf]
      %v167 = vadd.f32 %v164, 1e-05
      %v168 = vadd.f32 %v165, 1e-05
      %v169 = vrsqrt.pop %v167
      %v170 = vrsqrt.pop %v168
      %v173 = vcombine.low %v169, %v170
      %v175 = vunpack.c.l.s4 1983009808
      %v176 = vunpack.c.0.s8 %v175
      %v177 = vlaneseq
      %v178 = vshrl.u32 %v177, 7
      %v179 = vsub.s32 %v176, %v178
      %v180 = vrot.slane %v173, %v179
      %v182 = vmul.f32 %v166, %v180
      %v184 = vlaneseq
      %v185 = vshrl.u32 %v184, 7
      %v186 = vsub.s32 0, %v185
      %v187 = vrot.slane %v182, %v186
      %v188 = vlaneseq
      %v189 = vshrl.u32 %v188, 7
      %v190 = vsub.s32 2, %v189
      %v191 = vrot.slane %v182, %v190
      %v194 = vmul.f32 %v142, %v187
      %v195 = vmul.f32 %v143, %v191
      %v198 = vcombine.low %v194, %v195
      %v200 = vunpack.c.l.s4 1983009808
      %v201 = vunpack.c.0.s8 %v200
      %v202 = vlaneseq
      %v203 = vshrl.u32 %v202, 7
      %v204 = vsub.s32 %v201, %v203
      %v205 = vrot.slane %v198, %v204
      %v206 = vrot.slane %v205, 7
      %v208 = vsub.f32 %v166, %v206
      %v209 = vlaneseq
      %v210 = vshrl.u32 %v209, 7
      %v211 = vsub.s32 0, %v210
      %v212 = vrot.slane %v187, %v211
      %v213 = vlaneseq
      %v214 = vshrl.u32 %v213, 7
      %v215 = vsub.s32 0, %v214
      %v216 = vrot.slane %v191, %v215
      %v217 = vmul.f32 %v128, %v212
      %v218 = vmul.f32 %v129, %v216
      %v220 = vlaneseq
      %v221 = vshrl.u32 %v220, 7
      %v222 = vsub.s32 1, %v221
      %v223 = vrot.slane %v208, %v222
      %v224 = vlaneseq
      %v225 = vshrl.u32 %v224, 7
      %v226 = vsub.s32 3, %v225
      %v227 = vrot.slane %v208, %v226
      %v230 = vlaneseq
      %v231 = vshrl.u32 %v230, 7
      %v232 = vsub.s32 1, %v231
      %v233 = vrot.slane %v223, %v232
      %v234 = vlaneseq
      %v235 = vshrl.u32 %v234, 7
      %v236 = vsub.s32 1, %v235
      %v237 = vrot.slane %v227, %v236
      %v238 = vadd.f32 %v217, %v233
      %v239 = vadd.f32 %v218, %v237
      %v240 = vmax.f32 %v238, 0.0
      %v241 = vmax.f32 %v239, 0.0
      %v242 = vpack.c.bf16 %v240, %v240
      %v243 = vpack.c.bf16 %v241, %v241
      %v246 = vunpack.c.l.b16 %v242
      %v247 = vunpack.c.l.b16 %v243
      %v248 = vpack.c.b16 %v247, %v246
      %250 = vst [vmem:[#allocation8] sm:$0xff] %v248
    $region29: #{tpu_custom_call.1} parent=1 // pred_fallthru
      _
    // Predicated region
    $region30: #{tpu_custom_call.1} parent=1 // pred_check
      _
    $region31: #{tpu_custom_call.1} parent=1 // pred_check_branch
      %252 = sbr.rel (0) target = $region33
    $region32: #{tpu_custom_call.1} parent=1 // pred_region
      %s254 = ssub.s32 128, 128
      %255 = vsyncadd [#allocation5], %s254
      %s257 = sshll.u32 [#allocation8], 4
      %s258 = int_to_ptr.vmem [resolvable:$true] %s257
      %260 = dma.vmem_to_hbm [thread:$0]  %s258, 128, %s3, [#allocation5]
    $region33: #{tpu_custom_call.1} parent=1 // pred_fallthru
      _
    // Predicated region
    $region34: #{tpu_custom_call.1} parent=1 // pred_check
      _
    $region35: #{tpu_custom_call.1} parent=1 // pred_check_branch
      %262 = sbr.rel (0) target = $region37
    $region36: #{tpu_custom_call.1} parent=1 // pred_region
      %263 = dma.done [#allocation5], 128
    $region37: #{tpu_custom_call.1} parent=1 // pred_fallthru
      _
    %264 = vsyncpa [#allocation4], 1
    %265 = vsyncpa [#allocation7], 1
    %266 = vsyncpa [#allocation5], 1

</llo_original>
